<compile_context>
chip_gen: v6e
topology: v6e:2x2x1
jax: 0.10.0
libtpu: 0.0.40
codegen_flags: <defaults>
</compile_context>

<pallas_src>
import functools

import jax
import jax.numpy as jnp
from jax.experimental import pallas as pl
from jax.experimental.pallas import tpu as pltpu


# ----------------------------------------------------------------------------
# Fused kernel: embedding gather (scalar-prefetch index_map) + per-layer LSTM
# step + out2 linear + log-softmax. The layer loop is a serial dependence
# carried through `x` -- it must stay sequential on one TensorCore (do NOT
# mark anything parallel / core_parallel here).
# PyTorch LSTM gate order: i, f, g, o.
# ----------------------------------------------------------------------------
def _decoder_kernel(tok_ref, emb_ref, w_ref, b_ref, h0_ref, c0_ref,
                    w2_ref, b2_ref,
                    out_ref, hn_ref, cn_ref,
                    xh_scr, hflat_scr, *, hidden, layers):
    del tok_ref  # consumed by the embedding index_map (scalar prefetch)
    H = hidden

    # dropout (eval) is identity; then ReLU on the gathered embedding row.
    x = jnp.maximum(emb_ref[0], 0.0)                       # (1, H)

    for l in range(layers):                                # static unroll (L small)
        h = h0_ref[l]                                      # (1, H)
        c = c0_ref[l]                                      # (1, H)

        # Single fused gate matmul: [x, h] @ [W_ih^T ; W_hh^T] + (b_ih + b_hh)
        xh_scr[:, 0:H] = x
        xh_scr[:, H:2 * H] = h
        gates = (jnp.dot(xh_scr[...], w_ref[l],
                         preferred_element_type=jnp.float32)
                 + b_ref[l])                               # (1, 4H)

        # Activate full (1, 4H) vectors once, slice activated results.
        sig = jax.nn.sigmoid(gates)
        tnh = jnp.tanh(gates)
        i_g = sig[:, 0 * H:1 * H]
        f_g = sig[:, 1 * H:2 * H]
        g_g = tnh[:, 2 * H:3 * H]
        o_g = sig[:, 3 * H:4 * H]

        c_new = f_g * c + i_g * g_g
        h_new = o_g * jnp.tanh(c_new)

        hn_ref[l] = h_new
        cn_ref[l] = c_new
        hflat_scr[:, l * H:(l + 1) * H] = h_new            # == reshape(h_n, (1, -1))
        x = h_new                                          # input to next layer

    # out2 linear (H*L -> V) + log-softmax over dim=1, fused.
    logits = (jnp.dot(hflat_scr[...], w2_ref[...],
                      preferred_element_type=jnp.float32) + b2_ref[...])  # (1, V)
    m = jnp.max(logits, axis=-1, keepdims=True)
    z = logits - m
    lse = jnp.log(jnp.sum(jnp.exp(z), axis=-1, keepdims=True))
    out_ref[...] = z - lse
    # TODO(synk): for large V (>= thousands), tile the out2 weight over V in
    # lane-dense (multiple-of-128) blocks instead of one resident block
    # (matters for v7x's smaller VMEM and for store efficiency).


def prepare_params(raw):
    """One-time host-side weight fusion into the kernel layout."""
    V, H = raw["emb"].shape
    return {
        "emb3": raw["emb"].reshape(V, 1, H),                          # (V, 1, H)
        "w":    jnp.concatenate([raw["wih_t"], raw["whh_t"]], axis=1),  # (L, 2H, 4H)
        "b":    raw["bih"] + raw["bhh"],                              # (L, 1, 4H)
        "w2_t": raw["w2_t"],                                          # (L*H, V)
        "b2":   raw["b2"],                                            # (1, V)
    }


def decoder_lstm_forward(token, h0, c0, fused):
    """token: int32 scalar; h0, c0: (L, 1, H) f32. Returns (log_probs, (h_n, c_n))."""
    L, _, H = h0.shape
    V = fused["emb3"].shape[0]
    tok = token.reshape((1,)).astype(jnp.int32)    # scalar prefetch operand

    call = pl.pallas_call(
        functools.partial(_decoder_kernel, hidden=H, layers=L),
        out_shape=(
            jax.ShapeDtypeStruct((1, V), jnp.float32),      # log_probs
            jax.ShapeDtypeStruct((L, 1, H), jnp.float32),   # h_n
            jax.ShapeDtypeStruct((L, 1, H), jnp.float32),   # c_n
        ),
        grid_spec=pltpu.PrefetchScalarGridSpec(
            num_scalar_prefetch=1,
            grid=(1,),
            in_specs=[
                pl.BlockSpec((1, 1, H), lambda i, tok: (tok[0], 0, 0)),      # emb row
                pl.BlockSpec((L, 2 * H, 4 * H), lambda i, tok: (0, 0, 0)),   # [Wih;Whh]^T
                pl.BlockSpec((L, 1, 4 * H), lambda i, tok: (0, 0, 0)),       # bih+bhh
                pl.BlockSpec((L, 1, H), lambda i, tok: (0, 0, 0)),           # h0
                pl.BlockSpec((L, 1, H), lambda i, tok: (0, 0, 0)),           # c0
                pl.BlockSpec((L * H, V), lambda i, tok: (0, 0)),             # out2 W^T
                pl.BlockSpec((1, V), lambda i, tok: (0, 0)),                 # out2 b
            ],
            out_specs=(
                pl.BlockSpec((1, V), lambda i, tok: (0, 0)),
                pl.BlockSpec((L, 1, H), lambda i, tok: (0, 0, 0)),
                pl.BlockSpec((L, 1, H), lambda i, tok: (0, 0, 0)),
            ),
            scratch_shapes=[
                pltpu.VMEM((1, 2 * H), jnp.float32),    # [x, h] for fused matmul
                pltpu.VMEM((1, L * H), jnp.float32),    # flattened h_n
            ],
        ),
        compiler_params=pltpu.CompilerParams(
            # Single grid point; all serial work lives inside the body.
            dimension_semantics=("arbitrary",),
        ),
    )

    log_probs, h_n, c_n = call(tok, fused["emb3"], fused["w"], fused["b"],
                               h0, c0, fused["w2_t"], fused["b2"])
    return log_probs, (h_n, c_n)


# ----------------------------------------------------------------------------
# Pure-JAX reference (sanity check), operating on the raw (unfused) params.
# ----------------------------------------------------------------------------
def ref_forward(token, h0, c0, params):
    L, _, H = h0.shape
    x = jnp.maximum(params["emb"][token], 0.0)[None, :]   # (1, H)
    hs, cs = [], []
    for l in range(L):
        gates = (x @ params["wih_t"][l] + h0[l] @ params["whh_t"][l]
                 + params["bih"][l] + params["bhh"][l])
        i_g = jax.nn.sigmoid(gates[:, 0 * H:1 * H])
        f_g = jax.nn.sigmoid(gates[:, 1 * H:2 * H])
        g_g = jnp.tanh(gates[:, 2 * H:3 * H])
        o_g = jax.nn.sigmoid(gates[:, 3 * H:4 * H])
        c = f_g * c0[l] + i_g * g_g
        h = o_g * jnp.tanh(c)
        hs.append(h); cs.append(c)
        x = h
    h_n = jnp.stack(hs); c_n = jnp.stack(cs)
    logits = h_n.reshape(1, -1) @ params["w2_t"] + params["b2"]
    return jax.nn.log_softmax(logits, axis=1), (h_n, c_n)


if __name__ == "__main__":
    # Small shapes consistent with the module.
    hidden_size = 32     # H
    output_size = 16     # V (vocab)
    num_layers = 2       # L

    H, V, L = hidden_size, output_size, num_layers

    key = jax.random.PRNGKey(0)
    ks = jax.random.split(key, 8)
    scale = 0.1
    params = {
        "emb":   scale * jax.random.normal(ks[0], (V, H), jnp.float32),
        # LSTM weights stored pre-transposed: (L, in=H, 4H)
        "wih_t": scale * jax.random.normal(ks[1], (L, H, 4 * H), jnp.float32),
        "whh_t": scale * jax.random.normal(ks[2], (L, H, 4 * H), jnp.float32),
        "bih":   scale * jax.random.normal(ks[3], (L, 1, 4 * H), jnp.float32),
        "bhh":   scale * jax.random.normal(ks[4], (L, 1, 4 * H), jnp.float32),
        # out2: Linear(H*L -> V), stored transposed (H*L, V)
        "w2_t":  scale * jax.random.normal(ks[5], (L * H, V), jnp.float32),
        "b2":    scale * jax.random.normal(ks[6], (1, V), jnp.float32),
    }
    fused = jax.tree_util.tree_map(lambda x: x, prepare_params(params))

    token = jnp.array(3, dtype=jnp.int32)                  # decoder input token id
    h0 = jnp.zeros((L, 1, H), jnp.float32)                 # initHidden()
    c0 = 0.1 * jax.random.normal(ks[7], (L, 1, H), jnp.float32)  # initCell()-like state

    log_probs, (h_n, c_n) = decoder_lstm_forward(token, h0, c0, fused)
    jax.block_until_ready((log_probs, h_n, c_n))

    ref_lp, (ref_h, ref_c) = ref_forward(token, h0, c0, params)
    assert jnp.allclose(log_probs, ref_lp, atol=1e-4), "log_probs mismatch"
    assert jnp.allclose(h_n, ref_h, atol=1e-4), "h_n mismatch"
    assert jnp.allclose(c_n, ref_c, atol=1e-4), "c_n mismatch"

    print("KERNEL_OK")
</pallas_src>

<mosaic_0001>
module attributes {stable_mosaic.version = 11 : i64} {
  func.func @_decoder_kernel(%arg0: i32, %arg1: memref<1xi32, #tpu.memory_space<smem>>, %arg2: memref<1x1x32xf32, #tpu.memory_space<vmem>>, %arg3: memref<2x64x128xf32, #tpu.memory_space<vmem>>, %arg4: memref<2x1x128xf32, #tpu.memory_space<vmem>>, %arg5: memref<2x1x32xf32, #tpu.memory_space<vmem>>, %arg6: memref<2x1x32xf32, #tpu.memory_space<vmem>>, %arg7: memref<64x16xf32, #tpu.memory_space<vmem>>, %arg8: memref<1x16xf32, #tpu.memory_space<vmem>>, %arg9: memref<1x16xf32, #tpu.memory_space<vmem>>, %arg10: memref<2x1x32xf32, #tpu.memory_space<vmem>>, %arg11: memref<2x1x32xf32, #tpu.memory_space<vmem>>, %arg12: memref<1x64xf32, #tpu.memory_space<vmem>>, %arg13: memref<1x64xf32, #tpu.memory_space<vmem>>) attributes {dimension_semantics = [#tpu.dimension_semantics<arbitrary>], iteration_bounds = array<i64: 1>, scalar_prefetch = 1 : i64, scratch_operands = 2 : i64, tpu.core_type = #tpu.core_type<tc>, window_params = [{transform_indices = @transform_0, window_bounds = array<i64: 1, 1, 32>}, {pipeline_mode = #tpu.pipeline_mode<synchronous>, transform_indices = @transform_1, window_bounds = array<i64: 2, 64, 128>}, {pipeline_mode = #tpu.pipeline_mode<synchronous>, transform_indices = @transform_2, window_bounds = array<i64: 2, 1, 128>}, {pipeline_mode = #tpu.pipeline_mode<synchronous>, transform_indices = @transform_3, window_bounds = array<i64: 2, 1, 32>}, {pipeline_mode = #tpu.pipeline_mode<synchronous>, transform_indices = @transform_4, window_bounds = array<i64: 2, 1, 32>}, {pipeline_mode = #tpu.pipeline_mode<synchronous>, transform_indices = @transform_5, window_bounds = array<i64: 64, 16>}, {pipeline_mode = #tpu.pipeline_mode<synchronous>, transform_indices = @transform_6, window_bounds = array<i64: 1, 16>}, {pipeline_mode = #tpu.pipeline_mode<synchronous>, transform_indices = @transform_7, window_bounds = array<i64: 1, 16>}, {pipeline_mode = #tpu.pipeline_mode<synchronous>, transform_indices = @transform_8, window_bounds = array<i64: 2, 1, 32>}, {pipeline_mode = #tpu.pipeline_mode<synchronous>, transform_indices = @transform_9, window_bounds = array<i64: 2, 1, 32>}]} {
    %c0 = arith.constant 0 : index
    %c0_0 = arith.constant 0 : index
    %c0_1 = arith.constant 0 : index
    %0 = vector.load %arg2[%c0, %c0_0, %c0_1] : memref<1x1x32xf32, #tpu.memory_space<vmem>>, vector<1x1x32xf32>
    %1 = vector.shape_cast %0 : vector<1x1x32xf32> to vector<1x32xf32>
    %cst = arith.constant 0.000000e+00 : f32
    %2 = vector.broadcast %cst : f32 to vector<1x32xf32>
    %3 = arith.maximumf %1, %2 : vector<1x32xf32>
    %c0_2 = arith.constant 0 : index
    %c0_3 = arith.constant 0 : index
    %c0_4 = arith.constant 0 : index
    %4 = vector.load %arg5[%c0_2, %c0_3, %c0_4] : memref<2x1x32xf32, #tpu.memory_space<vmem>>, vector<1x1x32xf32>
    %5 = vector.shape_cast %4 : vector<1x1x32xf32> to vector<1x32xf32>
    %c0_5 = arith.constant 0 : index
    %c0_6 = arith.constant 0 : index
    %c0_7 = arith.constant 0 : index
    %6 = vector.load %arg6[%c0_5, %c0_6, %c0_7] : memref<2x1x32xf32, #tpu.memory_space<vmem>>, vector<1x1x32xf32>
    %7 = vector.shape_cast %6 : vector<1x1x32xf32> to vector<1x32xf32>
    %c0_8 = arith.constant 0 : index
    %c0_9 = arith.constant 0 : index
    %8 = vector.load %arg12[%c0_8, %c0_9] : memref<1x64xf32, #tpu.memory_space<vmem>>, vector<1x32xf32>
    tpu.vector_store %arg12[%c0_8, %c0_9], %3 {strides = array<i32>} : memref<1x64xf32, #tpu.memory_space<vmem>>, vector<1x32xf32>,
    %c0_10 = arith.constant 0 : index
    %c32 = arith.constant 32 : index
    %9 = vector.load %arg12[%c0_10, %c32] : memref<1x64xf32, #tpu.memory_space<vmem>>, vector<1x32xf32>
    tpu.vector_store %arg12[%c0_10, %c32], %5 {strides = array<i32>} : memref<1x64xf32, #tpu.memory_space<vmem>>, vector<1x32xf32>,
    %c0_11 = arith.constant 0 : index
    %c0_12 = arith.constant 0 : index
    %10 = vector.load %arg12[%c0_11, %c0_12] : memref<1x64xf32, #tpu.memory_space<vmem>>, vector<1x64xf32>
    %c0_13 = arith.constant 0 : index
    %c0_14 = arith.constant 0 : index
    %c0_15 = arith.constant 0 : index
    %11 = vector.load %arg3[%c0_13, %c0_14, %c0_15] : memref<2x64x128xf32, #tpu.memory_space<vmem>>, vector<1x64x128xf32>
    %12 = vector.shape_cast %11 : vector<1x64x128xf32> to vector<64x128xf32>
    %cst_16 = arith.constant dense<0.000000e+00> : vector<1x128xf32>
    %13 = tpu.matmul %10, %12, %cst_16 {dimension_numbers = #tpu.dot_dimension_numbers<[1], [0], [0], [1], [0, 0, 1, 1], [], []>} : vector<1x64xf32>, vector<64x128xf32>, vector<1x128xf32> -> vector<1x128xf32>
    %c0_17 = arith.constant 0 : index
    %c0_18 = arith.constant 0 : index
    %c0_19 = arith.constant 0 : index
    %14 = vector.load %arg4[%c0_17, %c0_18, %c0_19] : memref<2x1x128xf32, #tpu.memory_space<vmem>>, vector<1x1x128xf32>
    %15 = vector.shape_cast %14 : vector<1x1x128xf32> to vector<1x128xf32>
    %16 = arith.addf %13, %15 : vector<1x128xf32>
    %17 = arith.negf %16 : vector<1x128xf32>
    %18 = math.exp %17 : vector<1x128xf32>
    %cst_20 = arith.constant 1.000000e+00 : f32
    %19 = vector.broadcast %cst_20 : f32 to vector<1x128xf32>
    %20 = arith.addf %19, %18 : vector<1x128xf32>
    %21 = arith.divf %19, %20 : vector<1x128xf32>
    %22 = math.tanh %16 : vector<1x128xf32>
    %23 = vector.extract_strided_slice %21 {offsets = [0, 0], sizes = [1, 32], strides = [1, 1]} : vector<1x128xf32> to vector<1x32xf32>
    %24 = vector.extract_strided_slice %21 {offsets = [0, 32], sizes = [1, 32], strides = [1, 1]} : vector<1x128xf32> to vector<1x32xf32>
    %25 = vector.extract_strided_slice %22 {offsets = [0, 64], sizes = [1, 32], strides = [1, 1]} : vector<1x128xf32> to vector<1x32xf32>
    %26 = vector.extract_strided_slice %21 {offsets = [0, 96], sizes = [1, 32], strides = [1, 1]} : vector<1x128xf32> to vector<1x32xf32>
    %27 = arith.mulf %24, %7 : vector<1x32xf32>
    %28 = arith.mulf %23, %25 : vector<1x32xf32>
    %29 = arith.addf %27, %28 : vector<1x32xf32>
    %30 = math.tanh %29 : vector<1x32xf32>
    %31 = arith.mulf %26, %30 : vector<1x32xf32>
    %c0_21 = arith.constant 0 : index
    %c0_22 = arith.constant 0 : index
    %c0_23 = arith.constant 0 : index
    %32 = vector.load %arg10[%c0_21, %c0_22, %c0_23] : memref<2x1x32xf32, #tpu.memory_space<vmem>>, vector<1x1x32xf32>
    %33 = vector.shape_cast %32 : vector<1x1x32xf32> to vector<1x32xf32>
    %34 = vector.shape_cast %31 : vector<1x32xf32> to vector<1x1x32xf32>
    tpu.vector_store %arg10[%c0_21, %c0_22, %c0_23], %34 {strides = array<i32>} : memref<2x1x32xf32, #tpu.memory_space<vmem>>, vector<1x1x32xf32>,
    %c0_24 = arith.constant 0 : index
    %c0_25 = arith.constant 0 : index
    %c0_26 = arith.constant 0 : index
    %35 = vector.load %arg11[%c0_24, %c0_25, %c0_26] : memref<2x1x32xf32, #tpu.memory_space<vmem>>, vector<1x1x32xf32>
    %36 = vector.shape_cast %35 : vector<1x1x32xf32> to vector<1x32xf32>
    %37 = vector.shape_cast %29 : vector<1x32xf32> to vector<1x1x32xf32>
    tpu.vector_store %arg11[%c0_24, %c0_25, %c0_26], %37 {strides = array<i32>} : memref<2x1x32xf32, #tpu.memory_space<vmem>>, vector<1x1x32xf32>,
    %c0_27 = arith.constant 0 : index
    %c0_28 = arith.constant 0 : index
    %38 = vector.load %arg13[%c0_27, %c0_28] : memref<1x64xf32, #tpu.memory_space<vmem>>, vector<1x32xf32>
    tpu.vector_store %arg13[%c0_27, %c0_28], %31 {strides = array<i32>} : memref<1x64xf32, #tpu.memory_space<vmem>>, vector<1x32xf32>,
    %c1 = arith.constant 1 : index
    %c0_29 = arith.constant 0 : index
    %c0_30 = arith.constant 0 : index
    %39 = vector.load %arg5[%c1, %c0_29, %c0_30] : memref<2x1x32xf32, #tpu.memory_space<vmem>>, vector<1x1x32xf32>
    %40 = vector.shape_cast %39 : vector<1x1x32xf32> to vector<1x32xf32>
    %c1_31 = arith.constant 1 : index
    %c0_32 = arith.constant 0 : index
    %c0_33 = arith.constant 0 : index
    %41 = vector.load %arg6[%c1_31, %c0_32, %c0_33] : memref<2x1x32xf32, #tpu.memory_space<vmem>>, vector<1x1x32xf32>
    %42 = vector.shape_cast %41 : vector<1x1x32xf32> to vector<1x32xf32>
    %c0_34 = arith.constant 0 : index
    %c0_35 = arith.constant 0 : index
    %43 = vector.load %arg12[%c0_34, %c0_35] : memref<1x64xf32, #tpu.memory_space<vmem>>, vector<1x32xf32>
    tpu.vector_store %arg12[%c0_34, %c0_35], %31 {strides = array<i32>} : memref<1x64xf32, #tpu.memory_space<vmem>>, vector<1x32xf32>,
    %c0_36 = arith.constant 0 : index
    %c32_37 = arith.constant 32 : index
    %44 = vector.load %arg12[%c0_36, %c32_37] : memref<1x64xf32, #tpu.memory_space<vmem>>, vector<1x32xf32>
    tpu.vector_store %arg12[%c0_36, %c32_37], %40 {strides = array<i32>} : memref<1x64xf32, #tpu.memory_space<vmem>>, vector<1x32xf32>,
    %c0_38 = arith.constant 0 : index
    %c0_39 = arith.constant 0 : index
    %45 = vector.load %arg12[%c0_38, %c0_39] : memref<1x64xf32, #tpu.memory_space<vmem>>, vector<1x64xf32>
    %c1_40 = arith.constant 1 : index
    %c0_41 = arith.constant 0 : index
    %c0_42 = arith.constant 0 : index
    %46 = vector.load %arg3[%c1_40, %c0_41, %c0_42] : memref<2x64x128xf32, #tpu.memory_space<vmem>>, vector<1x64x128xf32>
    %47 = vector.shape_cast %46 : vector<1x64x128xf32> to vector<64x128xf32>
    %cst_43 = arith.constant dense<0.000000e+00> : vector<1x128xf32>
    %48 = tpu.matmul %45, %47, %cst_43 {dimension_numbers = #tpu.dot_dimension_numbers<[1], [0], [0], [1], [0, 0, 1, 1], [], []>} : vector<1x64xf32>, vector<64x128xf32>, vector<1x128xf32> -> vector<1x128xf32>
    %c1_44 = arith.constant 1 : index
    %c0_45 = arith.constant 0 : index
    %c0_46 = arith.constant 0 : index
    %49 = vector.load %arg4[%c1_44, %c0_45, %c0_46] : memref<2x1x128xf32, #tpu.memory_space<vmem>>, vector<1x1x128xf32>
    %50 = vector.shape_cast %49 : vector<1x1x128xf32> to vector<1x128xf32>
    %51 = arith.addf %48, %50 : vector<1x128xf32>
    %52 = arith.negf %51 : vector<1x128xf32>
    %53 = math.exp %52 : vector<1x128xf32>
    %cst_47 = arith.constant 1.000000e+00 : f32
    %54 = vector.broadcast %cst_47 : f32 to vector<1x128xf32>
    %55 = arith.addf %54, %53 : vector<1x128xf32>
    %56 = arith.divf %54, %55 : vector<1x128xf32>
    %57 = math.tanh %51 : vector<1x128xf32>
    %58 = vector.extract_strided_slice %56 {offsets = [0, 0], sizes = [1, 32], strides = [1, 1]} : vector<1x128xf32> to vector<1x32xf32>
    %59 = vector.extract_strided_slice %56 {offsets = [0, 32], sizes = [1, 32], strides = [1, 1]} : vector<1x128xf32> to vector<1x32xf32>
    %60 = vector.extract_strided_slice %57 {offsets = [0, 64], sizes = [1, 32], strides = [1, 1]} : vector<1x128xf32> to vector<1x32xf32>
    %61 = vector.extract_strided_slice %56 {offsets = [0, 96], sizes = [1, 32], strides = [1, 1]} : vector<1x128xf32> to vector<1x32xf32>
    %62 = arith.mulf %59, %42 : vector<1x32xf32>
    %63 = arith.mulf %58, %60 : vector<1x32xf32>
    %64 = arith.addf %62, %63 : vector<1x32xf32>
    %65 = math.tanh %64 : vector<1x32xf32>
    %66 = arith.mulf %61, %65 : vector<1x32xf32>
    %c1_48 = arith.constant 1 : index
    %c0_49 = arith.constant 0 : index
    %c0_50 = arith.constant 0 : index
    %67 = vector.load %arg10[%c1_48, %c0_49, %c0_50] : memref<2x1x32xf32, #tpu.memory_space<vmem>>, vector<1x1x32xf32>
    %68 = vector.shape_cast %67 : vector<1x1x32xf32> to vector<1x32xf32>
    %69 = vector.shape_cast %66 : vector<1x32xf32> to vector<1x1x32xf32>
    tpu.vector_store %arg10[%c1_48, %c0_49, %c0_50], %69 {strides = array<i32>} : memref<2x1x32xf32, #tpu.memory_space<vmem>>, vector<1x1x32xf32>,
    %c1_51 = arith.constant 1 : index
    %c0_52 = arith.constant 0 : index
    %c0_53 = arith.constant 0 : index
    %70 = vector.load %arg11[%c1_51, %c0_52, %c0_53] : memref<2x1x32xf32, #tpu.memory_space<vmem>>, vector<1x1x32xf32>
    %71 = vector.shape_cast %70 : vector<1x1x32xf32> to vector<1x32xf32>
    %72 = vector.shape_cast %64 : vector<1x32xf32> to vector<1x1x32xf32>
    tpu.vector_store %arg11[%c1_51, %c0_52, %c0_53], %72 {strides = array<i32>} : memref<2x1x32xf32, #tpu.memory_space<vmem>>, vector<1x1x32xf32>,
    %c0_54 = arith.constant 0 : index
    %c32_55 = arith.constant 32 : index
    %73 = vector.load %arg13[%c0_54, %c32_55] : memref<1x64xf32, #tpu.memory_space<vmem>>, vector<1x32xf32>
    tpu.vector_store %arg13[%c0_54, %c32_55], %66 {strides = array<i32>} : memref<1x64xf32, #tpu.memory_space<vmem>>, vector<1x32xf32>,
    %c0_56 = arith.constant 0 : index
    %c0_57 = arith.constant 0 : index
    %74 = vector.load %arg13[%c0_56, %c0_57] : memref<1x64xf32, #tpu.memory_space<vmem>>, vector<1x64xf32>
    %c0_58 = arith.constant 0 : index
    %c0_59 = arith.constant 0 : index
    %75 = vector.load %arg7[%c0_58, %c0_59] : memref<64x16xf32, #tpu.memory_space<vmem>>, vector<64x16xf32>
    %cst_60 = arith.constant dense<0.000000e+00> : vector<1x16xf32>
    %76 = tpu.matmul %74, %75, %cst_60 {dimension_numbers = #tpu.dot_dimension_numbers<[1], [0], [0], [1], [0, 0, 1, 1], [], []>} : vector<1x64xf32>, vector<64x16xf32>, vector<1x16xf32> -> vector<1x16xf32>
    %c0_61 = arith.constant 0 : index
    %c0_62 = arith.constant 0 : index
    %77 = vector.load %arg8[%c0_61, %c0_62] : memref<1x16xf32, #tpu.memory_space<vmem>>, vector<1x16xf32>
    %78 = arith.addf %76, %77 : vector<1x16xf32>
    %cst_63 = arith.constant dense<0xFF800000> : vector<1xf32>
    %79 = vector.multi_reduction <maximumf>, %78, %cst_63 [1] : vector<1x16xf32> to vector<1xf32>
    %80 = vector.shape_cast %79 : vector<1xf32> to vector<1x1xf32>
    %81 = vector.broadcast %80 : vector<1x1xf32> to vector<1x16xf32>
    %82 = arith.subf %78, %81 : vector<1x16xf32>
    %83 = math.exp %82 : vector<1x16xf32>
    %cst_64 = arith.constant dense<0.000000e+00> : vector<1xf32>
    %84 = vector.multi_reduction <add>, %83, %cst_64 [1] : vector<1x16xf32> to vector<1xf32>
    %85 = vector.shape_cast %84 : vector<1xf32> to vector<1x1xf32>
    %86 = math.log %85 : vector<1x1xf32>
    %87 = vector.broadcast %86 : vector<1x1xf32> to vector<1x16xf32>
    %88 = arith.subf %82, %87 : vector<1x16xf32>
    %c0_65 = arith.constant 0 : index
    %c0_66 = arith.constant 0 : index
    %89 = vector.load %arg9[%c0_65, %c0_66] : memref<1x16xf32, #tpu.memory_space<vmem>>, vector<1x16xf32>
    tpu.vector_store %arg9[%c0_65, %c0_66], %88 {strides = array<i32>} : memref<1x16xf32, #tpu.memory_space<vmem>>, vector<1x16xf32>,
    return
  }
  func.func @transform_0(%arg0: i32, %arg1: memref<1xi32, #tpu.memory_space<smem>>) -> (i32, i32, i32) {
    %c0 = arith.constant 0 : index
    %0 = memref.load %arg1[%c0] : memref<1xi32, #tpu.memory_space<smem>>
    %c0_i32 = arith.constant 0 : i32
    %c0_i32_0 = arith.constant 0 : i32
    %c0_i32_1 = arith.constant 0 : i32
    return %0, %c0_i32, %c0_i32_0 : i32, i32, i32
  }
  func.func @transform_1(%arg0: i32, %arg1: memref<1xi32, #tpu.memory_space<smem>>) -> (i32, i32, i32) {
    %c0_i32 = arith.constant 0 : i32
    %c0_i32_0 = arith.constant 0 : i32
    %c0_i32_1 = arith.constant 0 : i32
    %c0_i32_2 = arith.constant 0 : i32
    return %c0_i32, %c0_i32_0, %c0_i32_1 : i32, i32, i32
  }
  func.func @transform_2(%arg0: i32, %arg1: memref<1xi32, #tpu.memory_space<smem>>) -> (i32, i32, i32) {
    %c0_i32 = arith.constant 0 : i32
    %c0_i32_0 = arith.constant 0 : i32
    %c0_i32_1 = arith.constant 0 : i32
    %c0_i32_2 = arith.constant 0 : i32
    return %c0_i32, %c0_i32_0, %c0_i32_1 : i32, i32, i32
  }
  func.func @transform_3(%arg0: i32, %arg1: memref<1xi32, #tpu.memory_space<smem>>) -> (i32, i32, i32) {
    %c0_i32 = arith.constant 0 : i32
    %c0_i32_0 = arith.constant 0 : i32
    %c0_i32_1 = arith.constant 0 : i32
    %c0_i32_2 = arith.constant 0 : i32
    return %c0_i32, %c0_i32_0, %c0_i32_1 : i32, i32, i32
  }
  func.func @transform_4(%arg0: i32, %arg1: memref<1xi32, #tpu.memory_space<smem>>) -> (i32, i32, i32) {
    %c0_i32 = arith.constant 0 : i32
    %c0_i32_0 = arith.constant 0 : i32
    %c0_i32_1 = arith.constant 0 : i32
    %c0_i32_2 = arith.constant 0 : i32
    return %c0_i32, %c0_i32_0, %c0_i32_1 : i32, i32, i32
  }
  func.func @transform_5(%arg0: i32, %arg1: memref<1xi32, #tpu.memory_space<smem>>) -> (i32, i32) {
    %c0_i32 = arith.constant 0 : i32
    %c0_i32_0 = arith.constant 0 : i32
    %c0_i32_1 = arith.constant 0 : i32
    return %c0_i32, %c0_i32_0 : i32, i32
  }
  func.func @transform_6(%arg0: i32, %arg1: memref<1xi32, #tpu.memory_space<smem>>) -> (i32, i32) {
    %c0_i32 = arith.constant 0 : i32
    %c0_i32_0 = arith.constant 0 : i32
    %c0_i32_1 = arith.constant 0 : i32
    return %c0_i32, %c0_i32_0 : i32, i32
  }
  func.func @transform_7(%arg0: i32, %arg1: memref<1xi32, #tpu.memory_space<smem>>) -> (i32, i32) {
    %c0_i32 = arith.constant 0 : i32
    %c0_i32_0 = arith.constant 0 : i32
    %c0_i32_1 = arith.constant 0 : i32
    return %c0_i32, %c0_i32_0 : i32, i32
  }
  func.func @transform_8(%arg0: i32, %arg1: memref<1xi32, #tpu.memory_space<smem>>) -> (i32, i32, i32) {
    %c0_i32 = arith.constant 0 : i32
    %c0_i32_0 = arith.constant 0 : i32
    %c0_i32_1 = arith.constant 0 : i32
    %c0_i32_2 = arith.constant 0 : i32
    return %c0_i32, %c0_i32_0, %c0_i32_1 : i32, i32, i32
  }
  func.func @transform_9(%arg0: i32, %arg1: memref<1xi32, #tpu.memory_space<smem>>) -> (i32, i32, i32) {
    %c0_i32 = arith.constant 0 : i32
    %c0_i32_0 = arith.constant 0 : i32
    %c0_i32_1 = arith.constant 0 : i32
    %c0_i32_2 = arith.constant 0 : i32
    return %c0_i32, %c0_i32_0, %c0_i32_1 : i32, i32, i32
  }
}

</mosaic_0001>

<llo_original>
// kernel: tpu_custom_call.1
$region0: #{tpu_custom_call.1}
  #allocation0 [shape = 'u32[]', space=smem, size = 0x4, offset = 0x4, fixed_abs, tag = 'smem constant byte address 0x4 - core index']
  #allocation1 [shape = 'u32[144,128]{1,0:T(1,128)}', space=vmem, size = 0x12000, scoped, tag = 'internal scratch']
  #allocation2 [shape = 'f32[1,64]{1,0:T(1,128)}', space=vmem, size = 0x200, scoped, tag = 'scratch operand']
  #allocation3 [shape = 'f32[1,64]{1,0:T(1,128)}', space=vmem, size = 0x200, scoped, tag = 'scratch operand']
  #allocation4 [shape = 's32[1]{0}', space=sflag, size = 0x4, scoped, tag = 'scoped memory for tpu_custom_call.1']
  #allocation5 [shape = 's32[1]{0:T(128)S(6)}', space=smem, size = 0x200, scoped, tag = 'prefetched SMEM operand 0']
  %s0 = inlined_call_operand.<no memory space> [shape: s32[1], index: 0, kind: input, shape index: {}]
  %s1 = inlined_call_operand.vmem [shape: f32[16,1,32], index: 1, kind: input, shape index: {}]
  %s2 = inlined_call_operand.hbm [shape: f32[2,64,128], index: 2, kind: input, shape index: {}]
  %s3 = inlined_call_operand.vmem [shape: f32[2,1,128], index: 3, kind: input, shape index: {}]
  %s4 = inlined_call_operand.vmem [shape: f32[2,1,32], index: 4, kind: input, shape index: {}]
  %s5 = inlined_call_operand.vmem [shape: f32[2,1,32], index: 5, kind: input, shape index: {}]
  %s6 = inlined_call_operand.vmem [shape: f32[64,16], index: 6, kind: input, shape index: {}]
  %s7 = inlined_call_operand.vmem [shape: f32[1,16], index: 7, kind: input, shape index: {}]
  %s8 = inlined_call_operand.hbm [shape: f32[1,16], index: 8, kind: output, shape index: {0}]
  %s9 = inlined_call_operand.hbm [shape: f32[2,1,32], index: 9, kind: output, shape index: {1}]
  %s10 = inlined_call_operand.hbm [shape: f32[2,1,32], index: 10, kind: output, shape index: {2}]
  %11 = xla_tuple %s8, %s9, %s10
  %s12 = sld [smem:[#allocation0]]
  $region58: #{tpu_custom_call.1} parent=0
    _
  %s14 = ssub.s32 1, %s12
  %s15 = scalar_select 0, %s14, %s12
  %16 = sst [smem:[#allocation5]] %s0
  $region1: #{tpu_custom_call.1} parent=0
    #allocation6 [shape = 'u8[65536]{0}', space=vmem, size = 0x10000, scoped, tag = 'input window, operand 2, single buffered']
    #allocation7 [shape = 's32[1]{0}', space=sflag, size = 0x4, scoped, tag = 'scoped memory for tpu_custom_call.1']
    #allocation8 [shape = 's32[1]{0}', space=sflag, size = 0x4, scoped, tag = 'scoped memory for tpu_custom_call.1']
    #allocation9 [shape = 'u8[512]{0}', space=vmem, size = 0x400, scoped, tag = 'output window, operand 0, single buffered']
    #allocation10 [shape = 'u8[1024]{0}', space=vmem, size = 0x400, scoped, tag = 'output window, operand 1, single buffered']
    #allocation11 [shape = 's32[1]{0}', space=sflag, size = 0x4, scoped, tag = 'scoped memory for tpu_custom_call.1']
    #allocation12 [shape = 'u8[1024]{0}', space=vmem, size = 0x400, scoped, tag = 'output window, operand 2, single buffered']
    %17 = vsyncpa [#allocation7], 0
    %18 = vsyncpa [#allocation8], 0
    %19 = vsyncpa [#allocation11], 0
    // Predicated region
    $region2: #{tpu_custom_call.1} parent=1 // pred_check
      _
    $region3: #{tpu_custom_call.1} parent=1 // pred_check_branch
      %21 = sbr.rel (0) target = $region5
    $region4: #{tpu_custom_call.1} parent=1 // pred_region
      %s22 = sld [smem:[#allocation5]]
      %p23 = scmp.lt.s32.totalorder %s22, 15
      %s24 = scalar_select %p23, %s22, 15
      %s25 = scalar_lea.vmem %s1, %s24
      %s26 = sld [smem:[#allocation5]]
    $region5: #{tpu_custom_call.1} parent=1 // pred_fallthru
      _
    // Predicated region
    $region6: #{tpu_custom_call.1} parent=1 // pred_check
      _
    $region7: #{tpu_custom_call.1} parent=1 // pred_check_branch
      %28 = sbr.rel (0) target = $region9
    $region8: #{tpu_custom_call.1} parent=1 // pred_region
      %s30 = ssub.s32 2048, 2048
      %31 = vsyncadd [#allocation7], %s30
      %s32 = sshll.u32 [#allocation6], 4
      %s33 = int_to_ptr.vmem [resolvable:$true] %s32
      %38 = dma.hbm_to_vmem [thread:$0]  %s2, 2048, %s33, [#allocation7], 128, 128, 8
    $region9: #{tpu_custom_call.1} parent=1 // pred_fallthru
      _
    // Predicated region
    $region10: #{tpu_custom_call.1} parent=1 // pred_check
      _
    $region11: #{tpu_custom_call.1} parent=1 // pred_check_branch
      %40 = sbr.rel (0) target = $region13
    $region12: #{tpu_custom_call.1} parent=1 // pred_region
      _
    $region13: #{tpu_custom_call.1} parent=1 // pred_fallthru
      _
    // Predicated region
    $region14: #{tpu_custom_call.1} parent=1 // pred_check
      _
    $region15: #{tpu_custom_call.1} parent=1 // pred_check_branch
      %42 = sbr.rel (0) target = $region17
    $region16: #{tpu_custom_call.1} parent=1 // pred_region
      _
    $region17: #{tpu_custom_call.1} parent=1 // pred_fallthru
      _
    // Predicated region
    $region18: #{tpu_custom_call.1} parent=1 // pred_check
      _
    $region19: #{tpu_custom_call.1} parent=1 // pred_check_branch
      %44 = sbr.rel (0) target = $region21
    $region20: #{tpu_custom_call.1} parent=1 // pred_region
      _
    $region21: #{tpu_custom_call.1} parent=1 // pred_fallthru
      _
    // Predicated region
    $region22: #{tpu_custom_call.1} parent=1 // pred_check
      _
    $region23: #{tpu_custom_call.1} parent=1 // pred_check_branch
      %46 = sbr.rel (0) target = $region25
    $region24: #{tpu_custom_call.1} parent=1 // pred_region
      _
    $region25: #{tpu_custom_call.1} parent=1 // pred_fallthru
      _
    // Predicated region
    $region26: #{tpu_custom_call.1} parent=1 // pred_check
      _
    $region27: #{tpu_custom_call.1} parent=1 // pred_check_branch
      %48 = sbr.rel (0) target = $region29
    $region28: #{tpu_custom_call.1} parent=1 // pred_region
      _
    $region29: #{tpu_custom_call.1} parent=1 // pred_fallthru
      _
    // Predicated region
    $region30: #{tpu_custom_call.1} parent=1 // pred_check
      _
    $region31: #{tpu_custom_call.1} parent=1 // pred_check_branch
      %50 = sbr.rel (0) target = $region33
    $region32: #{tpu_custom_call.1} parent=1 // pred_region
      %51 = dma.done [#allocation7], 2048
    $region33: #{tpu_custom_call.1} parent=1 // pred_fallthru
      _
    %s52 = sld [smem:[#allocation5]]
    %p53 = scmp.lt.s32.totalorder %s52, 15
    %s54 = scalar_select %p53, %s52, 15
    %s55 = scalar_lea.vmem %s1, %s54
    %s56 = sld [smem:[#allocation5]]
    %p57 = scmp.lt.s32.totalorder %s56, 15
    %s58 = scalar_select %p57, %s56, 15
    %s59 = scalar_lea.vmem %s1, %s58
    %s60 = sld [smem:[#allocation5]]
    %v61 = vld [vmem:[%s59] sm:$0x1]
    %v62 = vmax.f32 %v61, 0.0
    %v63 = vld [vmem:[%s4] sm:$0x1]
    %v64 = vld [vmem:[%s5] sm:$0x1]
    %vm65 = vcmask 253952
    %66 = vst.msk [vmem:[#allocation2] sm:$0x1] %vm65, %v62
    %v68 = vlaneseq
    %v69 = vshrl.u32 %v68, 7
    %v70 = vsub.s32 0, %v69
    %v71 = vrot.slane %v63, %v70
    %72 = vrot.lane.b32.xlu0 %v71, 32
    %v73 = vpop.permute.xlu0 %72
    %vm75 = vcmask 516352
    %76 = vst.msk [vmem:[#allocation2] sm:$0x1] %vm75, %v73
    %v77 = vld [vmem:[#allocation2] sm:$0x1]
    %v78 = vld [vmem:[#allocation6] sm:$0xff]
    %v79 = vld [vmem:[#allocation6 + $0x8] sm:$0xff]
    %v80 = vld [vmem:[#allocation6 + $0x10] sm:$0xff]
    %v81 = vld [vmem:[#allocation6 + $0x18] sm:$0xff]
    %v82 = vld [vmem:[#allocation6 + $0x20] sm:$0xff]
    %v83 = vld [vmem:[#allocation6 + $0x28] sm:$0xff]
    %v84 = vld [vmem:[#allocation6 + $0x30] sm:$0xff]
    %v85 = vld [vmem:[#allocation6 + $0x38] sm:$0xff]
    %v86 = vld [vmem:[%s3] sm:$0x1]
    %vm87 = vcmask 523264
    %v89 = vsel %vm87, %v77, 0
    %91 = vmatprep.subr.mxu0 0.0
    %92 = vmatpush1.msra.mxu0 0.0
    %93 = vmatprep.subr.mxu0 0.0
    %94 = vmatpush1.msra.mxu0 0.0
    %95 = vmatprep.subr.mxu0 0.0
    %96 = vmatpush1.msra.mxu0 0.0
    %97 = vmatprep.subr.mxu0 0.0
    %98 = vmatpush1.msra.mxu0 0.0
    %99 = vmatprep.subr.mxu0 0.0
    %100 = vmatpush1.msra.mxu0 0.0
    %101 = vmatprep.subr.mxu0 0.0
    %102 = vmatpush1.msra.mxu0 0.0
    %103 = vmatprep.subr.mxu0 0.0
    %104 = vmatpush1.msra.mxu0 0.0
    %105 = vmatprep.subr.mxu0 0.0
    %106 = vmatpush1.msra.mxu0 0.0
    %107 = vmatprep.subr.mxu0 0.0
    %108 = vmatpush1.msra.mxu0 %v85
    %109 = vmatprep.subr.mxu0 0.0
    %110 = vmatpush1.msra.mxu0 %v84
    %111 = vmatprep.subr.mxu0 0.0
    %112 = vmatpush1.msra.mxu0 %v83
    %113 = vmatprep.subr.mxu0 0.0
    %114 = vmatpush1.msra.mxu0 %v82
    %115 = vmatprep.subr.mxu0 0.0
    %116 = vmatpush1.msra.mxu0 %v81
    %117 = vmatprep.subr.mxu0 0.0
    %118 = vmatpush1.msra.mxu0 %v80
    %119 = vmatprep.subr.mxu0 0.0
    %120 = vmatpush1.msra.mxu0 %v79
    %121 = vmatprep.subr.mxu0 0.0
    %122 = vmatpush1.msra.mxu0 %v78
    %123 = vmatprep.subr.mxu0 0.0
    %124 = vmatpush2.msra.mxu0 0.0
    %125 = vmatprep.subr.mxu0 0.0
    %126 = vmatpush2.msra.mxu0 0.0
    %127 = vmatprep.subr.mxu0 0.0
    %128 = vmatpush2.msra.mxu0 0.0
    %129 = vmatprep.subr.mxu0 0.0
    %130 = vmatpush2.msra.mxu0 0.0
    %131 = vmatprep.subr.mxu0 0.0
    %132 = vmatpush2.msra.mxu0 0.0
    %133 = vmatprep.subr.mxu0 0.0
    %134 = vmatpush2.msra.mxu0 0.0
    %135 = vmatprep.subr.mxu0 0.0
    %136 = vmatpush2.msra.mxu0 0.0
    %137 = vmatprep.subr.mxu0 0.0
    %138 = vmatpush2.msra.mxu0 0.0
    %139 = vmatprep.subr.mxu0 0.0
    %140 = vmatpush2.msra.mxu0 0.0
    %141 = vmatprep.subr.mxu0 0.0
    %142 = vmatpush2.msra.mxu0 0.0
    %143 = vmatprep.subr.mxu0 0.0
    %144 = vmatpush2.msra.mxu0 0.0
    %145 = vmatprep.subr.mxu0 0.0
    %146 = vmatpush2.msra.mxu0 0.0
    %147 = vmatprep.subr.mxu0 0.0
    %148 = vmatpush2.msra.mxu0 0.0
    %149 = vmatprep.subr.mxu0 0.0
    %150 = vmatpush2.msra.mxu0 0.0
    %151 = vmatprep.subr.mxu0 0.0
    %152 = vmatpush2.msra.mxu0 0.0
    %153 = vmatprep.subr.mxu0 0.0
    %154 = vmatpush2.msra.mxu0 0.0
    %155 = vmatprep.mubr.f32.mxu0 0.0
    %156 = vmatmul.mubr.f32.gmra.mxu0 %v89
    %v157 = vpop.f32.mrf.mxu0
    %v158 = vadd.f32 %v86, %v157
    %v159 = vpop.f32.mrf.mxu0
    %160 = vdwg.mxu0
    %v161 = vxor.u32 %v158, 2147483648
    %v162 = vmul.f32 %v161, 1.442695
    %v163 = vpow.pop %v162
    %v164 = vadd.f32 %v163, 1.0
    %v165 = vrcp.pop %v164
    %v166 = vmul.f32 1.0, %v165
    %v167 = vtanh.pop %v158
    %v169 = vlaneseq
    %v170 = vshrl.u32 %v169, 7
    %v171 = vsub.s32 0, %v170
    %v172 = vrot.slane %v64, %v171
    %173 = vrot.lane.b32.xlu0 %v172, 32
    %v174 = vpop.permute.xlu0 %173
    %v176 = vmul.f32 %v166, %v174
    %178 = vrot.lane.b32.xlu0 %v167, 64
    %v179 = vpop.permute.xlu0 %178
    %v181 = vmul.f32 %v166, %v179
    %183 = vrot.lane.b32.xlu0 %v181, 32
    %v184 = vpop.permute.xlu0 %183
    %v186 = vadd.f32 %v176, %v184
    %v187 = vtanh.pop %v186
    %189 = vrot.lane.b32.xlu0 %v187, 64
    %v190 = vpop.permute.xlu0 %189
    %v192 = vmul.f32 %v166, %v190
    %194 = vrot.lane.b32.xlu0 %v192, 32
    %v195 = vpop.permute.xlu0 %194
    %197 = vst.msk [vmem:[#allocation10] sm:$0x1] %vm65, %v195
    %199 = vrot.lane.b32.xlu0 %v186, 96
    %v200 = vpop.permute.xlu0 %199
    %202 = vst.msk [vmem:[#allocation12] sm:$0x1] %vm65, %v200
    %203 = vst.msk [vmem:[#allocation3] sm:$0x1] %vm65, %v195
    %s204 = scalar_lea.vmem %s4, 1
    %v205 = vld [vmem:[%s204] sm:$0x1]
    %s206 = scalar_lea.vmem %s5, 1
    %v207 = vld [vmem:[%s206] sm:$0x1]
    %208 = vst.msk [vmem:[#allocation2] sm:$0x1] %vm65, %v195
    %v210 = vlaneseq
    %v211 = vshrl.u32 %v210, 7
    %v212 = vsub.s32 0, %v211
    %v213 = vrot.slane %v205, %v212
    %214 = vrot.lane.b32.xlu0 %v213, 32
    %v215 = vpop.permute.xlu0 %214
    %217 = vst.msk [vmem:[#allocation2] sm:$0x1] %vm75, %v215
    %v218 = vld [vmem:[#allocation2] sm:$0x1]
    %s219 = scalar_lea.vmem [#allocation6], 64
    %v220 = vld [vmem:[%s219] sm:$0xff]
    %v221 = vld [vmem:[%s219 + $0x8] sm:$0xff]
    %v222 = vld [vmem:[%s219 + $0x10] sm:$0xff]
    %v223 = vld [vmem:[%s219 + $0x18] sm:$0xff]
    %v224 = vld [vmem:[%s219 + $0x20] sm:$0xff]
    %v225 = vld [vmem:[%s219 + $0x28] sm:$0xff]
    %v226 = vld [vmem:[%s219 + $0x30] sm:$0xff]
    %v227 = vld [vmem:[%s219 + $0x38] sm:$0xff]
    %s228 = scalar_lea.vmem %s3, 1
    %v229 = vld [vmem:[%s228] sm:$0x1]
    %v231 = vsel %vm87, %v218, 0
    %233 = vmatprep.subr.mxu0 0.0
    %234 = vmatpush1.msra.mxu0 0.0
    %235 = vmatprep.subr.mxu0 0.0
    %236 = vmatpush1.msra.mxu0 0.0
    %237 = vmatprep.subr.mxu0 0.0
    %238 = vmatpush1.msra.mxu0 0.0
    %239 = vmatprep.subr.mxu0 0.0
    %240 = vmatpush1.msra.mxu0 0.0
    %241 = vmatprep.subr.mxu0 0.0
    %242 = vmatpush1.msra.mxu0 0.0
    %243 = vmatprep.subr.mxu0 0.0
    %244 = vmatpush1.msra.mxu0 0.0
    %245 = vmatprep.subr.mxu0 0.0
    %246 = vmatpush1.msra.mxu0 0.0
    %247 = vmatprep.subr.mxu0 0.0
    %248 = vmatpush1.msra.mxu0 0.0
    %249 = vmatprep.subr.mxu0 0.0
    %250 = vmatpush1.msra.mxu0 %v227
    %251 = vmatprep.subr.mxu0 0.0
    %252 = vmatpush1.msra.mxu0 %v226
    %253 = vmatprep.subr.mxu0 0.0
    %254 = vmatpush1.msra.mxu0 %v225
    %255 = vmatprep.subr.mxu0 0.0
    %256 = vmatpush1.msra.mxu0 %v224
    %257 = vmatprep.subr.mxu0 0.0
    %258 = vmatpush1.msra.mxu0 %v223
    %259 = vmatprep.subr.mxu0 0.0
    %260 = vmatpush1.msra.mxu0 %v222
    %261 = vmatprep.subr.mxu0 0.0
    %262 = vmatpush1.msra.mxu0 %v221
    %263 = vmatprep.subr.mxu0 0.0
    %264 = vmatpush1.msra.mxu0 %v220
    %265 = vmatprep.subr.mxu0 0.0
    %266 = vmatpush2.msra.mxu0 0.0
    %267 = vmatprep.subr.mxu0 0.0
    %268 = vmatpush2.msra.mxu0 0.0
    %269 = vmatprep.subr.mxu0 0.0
    %270 = vmatpush2.msra.mxu0 0.0
    %271 = vmatprep.subr.mxu0 0.0
    %272 = vmatpush2.msra.mxu0 0.0
    %273 = vmatprep.subr.mxu0 0.0
    %274 = vmatpush2.msra.mxu0 0.0
    %275 = vmatprep.subr.mxu0 0.0
    %276 = vmatpush2.msra.mxu0 0.0
    %277 = vmatprep.subr.mxu0 0.0
    %278 = vmatpush2.msra.mxu0 0.0
    %279 = vmatprep.subr.mxu0 0.0
    %280 = vmatpush2.msra.mxu0 0.0
    %281 = vmatprep.subr.mxu0 0.0
    %282 = vmatpush2.msra.mxu0 0.0
    %283 = vmatprep.subr.mxu0 0.0
    %284 = vmatpush2.msra.mxu0 0.0
    %285 = vmatprep.subr.mxu0 0.0
    %286 = vmatpush2.msra.mxu0 0.0
    %287 = vmatprep.subr.mxu0 0.0
    %288 = vmatpush2.msra.mxu0 0.0
    %289 = vmatprep.subr.mxu0 0.0
    %290 = vmatpush2.msra.mxu0 0.0
    %291 = vmatprep.subr.mxu0 0.0
    %292 = vmatpush2.msra.mxu0 0.0
    %293 = vmatprep.subr.mxu0 0.0
    %294 = vmatpush2.msra.mxu0 0.0
    %295 = vmatprep.subr.mxu0 0.0
    %296 = vmatpush2.msra.mxu0 0.0
    %297 = vmatprep.mubr.f32.mxu0 0.0
    %298 = vmatmul.mubr.f32.gmra.mxu0 %v231
    %v299 = vpop.f32.mrf.mxu0
    %v300 = vadd.f32 %v229, %v299
    %v301 = vpop.f32.mrf.mxu0
    %302 = vdwg.mxu0
    %v303 = vxor.u32 %v300, 2147483648
    %v304 = vmul.f32 %v303, 1.442695
    %v305 = vpow.pop %v304
    %v306 = vadd.f32 %v305, 1.0
    %v307 = vrcp.pop %v306
    %v308 = vmul.f32 1.0, %v307
    %v309 = vtanh.pop %v300
    %v311 = vlaneseq
    %v312 = vshrl.u32 %v311, 7
    %v313 = vsub.s32 0, %v312
    %v314 = vrot.slane %v207, %v313
    %315 = vrot.lane.b32.xlu0 %v314, 32
    %v316 = vpop.permute.xlu0 %315
    %v318 = vmul.f32 %v308, %v316
    %320 = vrot.lane.b32.xlu0 %v309, 64
    %v321 = vpop.permute.xlu0 %320
    %v323 = vmul.f32 %v308, %v321
    %325 = vrot.lane.b32.xlu0 %v323, 32
    %v326 = vpop.permute.xlu0 %325
    %v328 = vadd.f32 %v318, %v326
    %v329 = vtanh.pop %v328
    %331 = vrot.lane.b32.xlu0 %v329, 64
    %v332 = vpop.permute.xlu0 %331
    %v334 = vmul.f32 %v308, %v332
    %336 = vrot.lane.b32.xlu0 %v334, 32
    %v337 = vpop.permute.xlu0 %336
    %s339 = scalar_lea.vmem [#allocation10], 1
    %340 = vst.msk [vmem:[%s339] sm:$0x1] %vm65, %v337
    %342 = vrot.lane.b32.xlu0 %v328, 96
    %v343 = vpop.permute.xlu0 %342
    %s345 = scalar_lea.vmem [#allocation12], 1
    %346 = vst.msk [vmem:[%s345] sm:$0x1] %vm65, %v343
    %347 = vrot.lane.b32.xlu0 %v334, 64
    %v348 = vpop.permute.xlu0 %347
    %350 = vst.msk [vmem:[#allocation3] sm:$0x1] %vm75, %v348
    %v351 = vld [vmem:[#allocation3] sm:$0x1]
    %v352 = vld [vmem:[%s6] sm:$0xff]
    %v353 = vld [vmem:[%s6 + $0x8] sm:$0xff]
    %v354 = vld [vmem:[%s6 + $0x10] sm:$0xff]
    %v355 = vld [vmem:[%s6 + $0x18] sm:$0xff]
    %v356 = vld [vmem:[%s6 + $0x20] sm:$0xff]
    %v357 = vld [vmem:[%s6 + $0x28] sm:$0xff]
    %v358 = vld [vmem:[%s6 + $0x30] sm:$0xff]
    %v359 = vld [vmem:[%s6 + $0x38] sm:$0xff]
    %v360 = vld [vmem:[%s7] sm:$0x1]
    %v362 = vsel %vm87, %v351, 0
    %364 = vmatprep.subr.mxu0 0.0
    %365 = vmatpush1.msra.mxu0 0.0
    %366 = vmatprep.subr.mxu0 0.0
    %367 = vmatpush1.msra.mxu0 0.0
    %368 = vmatprep.subr.mxu0 0.0
    %369 = vmatpush1.msra.mxu0 0.0
    %370 = vmatprep.subr.mxu0 0.0
    %371 = vmatpush1.msra.mxu0 0.0
    %372 = vmatprep.subr.mxu0 0.0
    %373 = vmatpush1.msra.mxu0 0.0
    %374 = vmatprep.subr.mxu0 0.0
    %375 = vmatpush1.msra.mxu0 0.0
    %376 = vmatprep.subr.mxu0 0.0
    %377 = vmatpush1.msra.mxu0 0.0
    %378 = vmatprep.subr.mxu0 0.0
    %379 = vmatpush1.msra.mxu0 0.0
    %380 = vmatprep.subr.mxu0 0.0
    %381 = vmatpush1.msra.mxu0 %v359
    %382 = vmatprep.subr.mxu0 0.0
    %383 = vmatpush1.msra.mxu0 %v358
    %384 = vmatprep.subr.mxu0 0.0
    %385 = vmatpush1.msra.mxu0 %v357
    %386 = vmatprep.subr.mxu0 0.0
    %387 = vmatpush1.msra.mxu0 %v356
    %388 = vmatprep.subr.mxu0 0.0
    %389 = vmatpush1.msra.mxu0 %v355
    %390 = vmatprep.subr.mxu0 0.0
    %391 = vmatpush1.msra.mxu0 %v354
    %392 = vmatprep.subr.mxu0 0.0
    %393 = vmatpush1.msra.mxu0 %v353
    %394 = vmatprep.subr.mxu0 0.0
    %395 = vmatpush1.msra.mxu0 %v352
    %396 = vmatprep.subr.mxu0 0.0
    %397 = vmatpush2.msra.mxu0 0.0
    %398 = vmatprep.subr.mxu0 0.0
    %399 = vmatpush2.msra.mxu0 0.0
    %400 = vmatprep.subr.mxu0 0.0
    %401 = vmatpush2.msra.mxu0 0.0
    %402 = vmatprep.subr.mxu0 0.0
    %403 = vmatpush2.msra.mxu0 0.0
    %404 = vmatprep.subr.mxu0 0.0
    %405 = vmatpush2.msra.mxu0 0.0
    %406 = vmatprep.subr.mxu0 0.0
    %407 = vmatpush2.msra.mxu0 0.0
    %408 = vmatprep.subr.mxu0 0.0
    %409 = vmatpush2.msra.mxu0 0.0
    %410 = vmatprep.subr.mxu0 0.0
    %411 = vmatpush2.msra.mxu0 0.0
    %412 = vmatprep.subr.mxu0 0.0
    %413 = vmatpush2.msra.mxu0 0.0
    %414 = vmatprep.subr.mxu0 0.0
    %415 = vmatpush2.msra.mxu0 0.0
    %416 = vmatprep.subr.mxu0 0.0
    %417 = vmatpush2.msra.mxu0 0.0
    %418 = vmatprep.subr.mxu0 0.0
    %419 = vmatpush2.msra.mxu0 0.0
    %420 = vmatprep.subr.mxu0 0.0
    %421 = vmatpush2.msra.mxu0 0.0
    %422 = vmatprep.subr.mxu0 0.0
    %423 = vmatpush2.msra.mxu0 0.0
    %424 = vmatprep.subr.mxu0 0.0
    %425 = vmatpush2.msra.mxu0 0.0
    %426 = vmatprep.subr.mxu0 0.0
    %427 = vmatpush2.msra.mxu0 0.0
    %428 = vmatprep.mubr.f32.mxu0 0.0
    %429 = vmatmul.mubr.f32.gmra.mxu0 %v362
    %v430 = vpop.f32.mrf.mxu0
    %v431 = vadd.f32 %v360, %v430
    %v432 = vpop.f32.mrf.mxu0
    %433 = vdwg.mxu0
    %vm434 = vcmask 122880
    %v435 = vsel %vm434, %v431, -inf
    %436 = vmax.xlane.f32.xlu0 %v435
    %v437 = vpop.xlane.xlu0 %436
    %v438 = vsub.f32 %v431, %v437
    %v439 = vmul.f32 %v438, 1.442695
    %v440 = vpow.pop %v439
    %v441 = vsel %vm434, %v440, 0.0
    %442 = vadd.xlane.f32.xlu0 %v441
    %v443 = vpop.xlane.xlu0 %442
    %v444 = vlog2.pop %v443
    %v445 = vmul.f32 %v444, 0.6931472
    %v446 = vsub.f32 %v438, %v445
    %447 = vst.msk [vmem:[#allocation9] sm:$0x1] %vm434, %v446
    // Predicated region
    $region34: #{tpu_custom_call.1} parent=1 // pred_check
      _
    $region35: #{tpu_custom_call.1} parent=1 // pred_check_branch
      %449 = sbr.rel (0) target = $region37
    $region36: #{tpu_custom_call.1} parent=1 // pred_region
      %s451 = ssub.s32 16, 16
      %452 = vsyncadd [#allocation8], %s451
      %s454 = sshll.u32 [#allocation9], 4
      %s455 = int_to_ptr.vmem [resolvable:$true] %s454
      %457 = dma.vmem_to_hbm [thread:$0]  %s455, 16, %s8, [#allocation8]
    $region37: #{tpu_custom_call.1} parent=1 // pred_fallthru
      _
    // Predicated region
    $region38: #{tpu_custom_call.1} parent=1 // pred_check
      _
    $region39: #{tpu_custom_call.1} parent=1 // pred_check_branch
      %459 = sbr.rel (0) target = $region41
    $region40: #{tpu_custom_call.1} parent=1 // pred_region
      %s461 = ssub.s32 32, 32
      %462 = vsyncadd [#allocation11], %s461
      %s463 = sshll.u32 [#allocation10], 4
      %s464 = int_to_ptr.vmem [resolvable:$true] %s463
      %469 = dma.vmem_to_hbm [thread:$0]  %s464, 32, %s9, [#allocation11], 16, 16, 1
    $region41: #{tpu_custom_call.1} parent=1 // pred_fallthru
      _
    // Predicated region
    $region42: #{tpu_custom_call.1} parent=1 // pred_check
      _
    $region43: #{tpu_custom_call.1} parent=1 // pred_check_branch
      %471 = sbr.rel (0) target = $region45
    $region44: #{tpu_custom_call.1} parent=1 // pred_region
      %s473 = ssub.s32 32, 32
      %474 = vsyncadd [#allocation11], %s473
      %s475 = sshll.u32 [#allocation12], 4
      %s476 = int_to_ptr.vmem [resolvable:$true] %s475
      %481 = dma.vmem_to_hbm [thread:$0]  %s476, 32, %s10, [#allocation11], 16, 16, 1
    $region45: #{tpu_custom_call.1} parent=1 // pred_fallthru
      _
    // Predicated region
    $region46: #{tpu_custom_call.1} parent=1 // pred_check
      _
    $region47: #{tpu_custom_call.1} parent=1 // pred_check_branch
      %483 = sbr.rel (0) target = $region49
    $region48: #{tpu_custom_call.1} parent=1 // pred_region
      %484 = dma.done [#allocation8], 16
    $region49: #{tpu_custom_call.1} parent=1 // pred_fallthru
      _
    // Predicated region
    $region50: #{tpu_custom_call.1} parent=1 // pred_check
      _
    $region51: #{tpu_custom_call.1} parent=1 // pred_check_branch
      %486 = sbr.rel (0) target = $region53
    $region52: #{tpu_custom_call.1} parent=1 // pred_region
      %487 = dma.done [#allocation11], 32
    $region53: #{tpu_custom_call.1} parent=1 // pred_fallthru
      _
    // Predicated region
    $region54: #{tpu_custom_call.1} parent=1 // pred_check
      _
    $region55: #{tpu_custom_call.1} parent=1 // pred_check_branch
      %489 = sbr.rel (0) target = $region57
    $region56: #{tpu_custom_call.1} parent=1 // pred_region
      %490 = dma.done [#allocation11], 32
    $region57: #{tpu_custom_call.1} parent=1 // pred_fallthru
      _
    %491 = vsyncpa [#allocation7], 1
    %492 = vsyncpa [#allocation8], 1
    %493 = vsyncpa [#allocation11], 1

</llo_original>
